<compile_context>
chip_gen: v7x
topology: tpu7x:2x2x1
jax: 0.10.0
libtpu: 0.0.40
codegen_flags: <defaults>
</compile_context>

<pallas_src>
import math
from functools import partial

import jax
import jax.numpy as jnp
from jax.experimental import pallas as pl
from jax.experimental.pallas import tpu as pltpu


def _round_up(a: int, m: int) -> int:
    return ((a + m - 1) // m) * m


def mlp_kernel(x_ref, w0_ref, wr_ref, b_ref, out_ref):
    """One fused-MLP batch tile.

    x_ref  : [TM, n_in]    f32   un-padded input tile
    w0_ref : [n_in, D]     f32   first-layer weight, pre-transposed, columns zero-padded
    wr_ref : [L-1, D, D]   bf16  remaining weights, pre-transposed, zero-padded, VMEM-resident
    b_ref  : [L, 1, D]     f32   all biases, zero-padded, VMEM-resident
    out_ref: [TM, D]       bf16  lane-dense padded output slab
    """
    # Layer 0 in f32 (K = n_in is tiny; keeps first-layer precision, no wrapper-side cast).
    acc = jnp.dot(x_ref[...], w0_ref[...], preferred_element_type=jnp.float32) + b_ref[0]
    # Hidden -> hidden / hidden -> out layers: ReLU, then bf16 matmul with f32 accumulation.
    for l in range(wr_ref.shape[0]):                      # statically unrolled (L is small)
        h = jnp.maximum(acc, 0.0).astype(jnp.bfloat16)    # ReLU only between layers
        acc = jnp.dot(h, wr_ref[l], preferred_element_type=jnp.float32) + b_ref[l + 1]
    out_ref[...] = acc.astype(out_ref.dtype)              # linear output (out_fn=None)


def pack_params(params):
    """Pack PyTorch-convention params [(W:[out,in], b:[out]), ...] ONCE, outside the forward
    path.  Returns (w0, w_rest, b_packed):
      w0       f32  [n_in, D]     first-layer weight, pre-transposed, columns zero-padded
      w_rest   bf16 [L-1, D, D]   layers 1..L-1, pre-transposed, zero-padded
      b_packed f32  [L, 1, D]     all biases, zero-padded
    """
    L = len(params)
    if L < 2:
        raise NotImplementedError(
            "Pallas path expects >=2 layers; a single Linear has no fusion benefit -- use jnp.")
    n_in = params[0][0].shape[1]
    D = _round_up(max(w.shape[0] for (w, _) in params), 128)

    w0 = jnp.zeros((n_in, D), jnp.float32)
    w0 = w0.at[:, : params[0][0].shape[0]].set(params[0][0].T.astype(jnp.float32))

    w_rest = jnp.zeros((L - 1, D, D), jnp.bfloat16)
    b_packed = jnp.zeros((L, 1, D), jnp.float32)
    b_packed = b_packed.at[0, 0, : params[0][1].shape[0]].set(params[0][1].astype(jnp.float32))
    for l in range(1, L):
        w, b = params[l]
        out_dim, in_dim = w.shape
        w_rest = w_rest.at[l - 1, :in_dim, :out_dim].set(w.T.astype(jnp.bfloat16))
        b_packed = b_packed.at[l, 0, :out_dim].set(b.astype(jnp.float32))
    return w0, w_rest, b_packed


@partial(jax.jit, static_argnames=("n_out", "max_tile_m"))
def target_network_forward_packed(x, w0, w_rest, b_packed, *, n_out, max_tile_m=2048):
    """y = MLP(x) with ReLU between hidden layers and a linear output layer."""
    batch, n_in = x.shape
    assert n_in == w0.shape[0]
    D = w0.shape[1]
    L = b_packed.shape[0]
    assert w_rest.shape[0] == L - 1

    # Batch tiling: big tiles (amortize the ~0.35 us/grid-step overhead), >= 2 tiles when the
    # batch is large enough so the "parallel" axis can shard across v7x's 2 TensorCores, and
    # right-sized so the ragged last tile wastes little DMA/MXU work.
    num_tiles = pl.cdiv(batch, max_tile_m)
    if num_tiles < 2 and batch >= 256:
        num_tiles = 2                                      # megacore split; no-op on v5e/v6e
    tile_m = _round_up(pl.cdiv(batch, num_tiles), 16)      # 16: bf16 sublane packing of out slab
    grid_m = pl.cdiv(batch, tile_m)
    batch_pad = grid_m * tile_m

    x_in = x.astype(jnp.float32)
    if batch_pad != batch:
        # Row-only padding of the narrow (batch, n_in) input; no lane padding and no dtype
        # round-trip through HBM (padded lanes come from the zero-padded w0 columns in-kernel).
        x_in = jnp.pad(x_in, ((0, batch_pad - batch), (0, 0)))

    flops = 2 * batch_pad * D * (n_in + (L - 1) * D)
    bytes_accessed = int(x_in.size * 4 + w0.size * 4 + w_rest.size * 2
                         + b_packed.size * 4 + batch_pad * D * 2)

    out_padded = pl.pallas_call(
        mlp_kernel,
        out_shape=jax.ShapeDtypeStruct((batch_pad, D), jnp.bfloat16),
        grid=(grid_m,),
        in_specs=[
            pl.BlockSpec((tile_m, n_in), lambda i: (i, 0)),     # x: tiled over batch
            pl.BlockSpec((n_in, D), lambda i: (0, 0)),          # w0: VMEM-resident
            pl.BlockSpec((L - 1, D, D), lambda i: (0, 0, 0)),   # rest weights: VMEM-resident
            pl.BlockSpec((L, 1, D), lambda i: (0, 0, 0)),       # biases: VMEM-resident
        ],
        out_specs=pl.BlockSpec((tile_m, D), lambda i: (i, 0)),
        compiler_params=pltpu.CompilerParams(
            dimension_semantics=("parallel",)),
        cost_estimate=pl.CostEstimate(flops=flops, transcendentals=0,
                                      bytes_accessed=bytes_accessed),
    )(x_in, w0, w_rest, b_packed)

    # Slice away batch/lane padding; upcast for the caller.
    return out_padded[:batch, :n_out].astype(jnp.float32)


def reference_forward(x, params):
    """Pure-JAX f32 reference of the module's forward semantics."""
    h = x
    for i, (w, b) in enumerate(params):
        h = h @ w.T + b
        if i < len(params) - 1:
            h = jnp.maximum(h, 0.0)
    return h


def init_linear(key, out_dim, in_dim):
    """Mimic init_params: kaiming_uniform_(a=sqrt(5)) on W and uniform bias.
    For a=sqrt(5) the kaiming bound reduces to 1/sqrt(fan_in), same as the bias bound."""
    kw, kb = jax.random.split(key)
    bound = 1.0 / math.sqrt(in_dim)
    w = jax.random.uniform(kw, (out_dim, in_dim), jnp.float32, -bound, bound)
    b = jax.random.uniform(kb, (out_dim,), jnp.float32, -bound, bound)
    return w, b


if __name__ == "__main__":
    # TargetNetwork(n_in=4, n_out=2, hidden_layers=[32, 32], use_bias=True)
    n_in, n_out = 4, 2
    hidden_layers = [32, 32]
    batch = 8

    key = jax.random.PRNGKey(0)
    k_x, k0, k1, k2 = jax.random.split(key, 4)

    x = jax.random.normal(k_x, (batch, n_in), jnp.float32)
    params = [
        init_linear(k0, hidden_layers[0], n_in),
        init_linear(k1, hidden_layers[1], hidden_layers[0]),
        init_linear(k2, n_out, hidden_layers[1]),
    ]

    # Pack once (hoisted out of the per-forward path), then run the fused kernel.
    w0, w_rest, b_packed = pack_params(params)
    y = target_network_forward_packed(x, w0, w_rest, b_packed, n_out=n_out)
    y = jax.block_until_ready(y)

    y_ref = reference_forward(x, params)

    assert y.shape == (batch, n_out)
    assert jnp.allclose(y, y_ref, atol=5e-2, rtol=5e-2), (
        f"max abs err {jnp.max(jnp.abs(y - y_ref))}")

    print("KERNEL_OK")
</pallas_src>

<mosaic_0001>
module attributes {stable_mosaic.version = 11 : i64} {
  func.func @mlp_kernel(%arg0: i32, %arg1: memref<16x4xf32, #tpu.memory_space<vmem>>, %arg2: memref<4x128xf32, #tpu.memory_space<vmem>>, %arg3: memref<2x128x128xbf16, #tpu.memory_space<vmem>>, %arg4: memref<3x1x128xf32, #tpu.memory_space<vmem>>, %arg5: memref<16x128xbf16, #tpu.memory_space<vmem>>) attributes {dimension_semantics = [#tpu.dimension_semantics<parallel>], iteration_bounds = array<i64: 1>, scalar_prefetch = 0 : i64, scratch_operands = 0 : i64, tpu.core_type = #tpu.core_type<tc>, window_params = [{transform_indices = @transform_0, window_bounds = array<i64: 16, 4>}, {pipeline_mode = #tpu.pipeline_mode<synchronous>, transform_indices = @transform_1, window_bounds = array<i64: 4, 128>}, {pipeline_mode = #tpu.pipeline_mode<synchronous>, transform_indices = @transform_2, window_bounds = array<i64: 2, 128, 128>}, {pipeline_mode = #tpu.pipeline_mode<synchronous>, transform_indices = @transform_3, window_bounds = array<i64: 3, 1, 128>}, {transform_indices = @transform_4, window_bounds = array<i64: 16, 128>}]} {
    %c0 = arith.constant 0 : index
    %c0_0 = arith.constant 0 : index
    %0 = vector.load %arg1[%c0, %c0_0] : memref<16x4xf32, #tpu.memory_space<vmem>>, vector<16x4xf32>
    %c0_1 = arith.constant 0 : index
    %c0_2 = arith.constant 0 : index
    %1 = vector.load %arg2[%c0_1, %c0_2] : memref<4x128xf32, #tpu.memory_space<vmem>>, vector<4x128xf32>
    %cst = arith.constant dense<0.000000e+00> : vector<16x128xf32>
    %2 = tpu.matmul %0, %1, %cst {dimension_numbers = #tpu.dot_dimension_numbers<[1], [0], [0], [1], [0, 0, 1, 1], [], []>} : vector<16x4xf32>, vector<4x128xf32>, vector<16x128xf32> -> vector<16x128xf32>
    %c0_3 = arith.constant 0 : index
    %c0_4 = arith.constant 0 : index
    %c0_5 = arith.constant 0 : index
    %3 = vector.load %arg4[%c0_3, %c0_4, %c0_5] : memref<3x1x128xf32, #tpu.memory_space<vmem>>, vector<1x1x128xf32>
    %4 = vector.shape_cast %3 : vector<1x1x128xf32> to vector<1x128xf32>
    %5 = vector.broadcast %4 : vector<1x128xf32> to vector<16x128xf32>
    %6 = arith.addf %2, %5 : vector<16x128xf32>
    %cst_6 = arith.constant 0.000000e+00 : f32
    %7 = vector.broadcast %cst_6 : f32 to vector<16x128xf32>
    %8 = arith.maximumf %6, %7 : vector<16x128xf32>
    %9 = arith.truncf %8 : vector<16x128xf32> to vector<16x128xbf16>
    %c0_7 = arith.constant 0 : index
    %c0_8 = arith.constant 0 : index
    %c0_9 = arith.constant 0 : index
    %10 = vector.load %arg3[%c0_7, %c0_8, %c0_9] : memref<2x128x128xbf16, #tpu.memory_space<vmem>>, vector<1x128x128xbf16>
    %11 = vector.shape_cast %10 : vector<1x128x128xbf16> to vector<128x128xbf16>
    %cst_10 = arith.constant dense<0.000000e+00> : vector<16x128xf32>
    %12 = tpu.matmul %9, %11, %cst_10 {dimension_numbers = #tpu.dot_dimension_numbers<[1], [0], [0], [1], [0, 0, 1, 1], [], []>} : vector<16x128xbf16>, vector<128x128xbf16>, vector<16x128xf32> -> vector<16x128xf32>
    %c1 = arith.constant 1 : index
    %c0_11 = arith.constant 0 : index
    %c0_12 = arith.constant 0 : index
    %13 = vector.load %arg4[%c1, %c0_11, %c0_12] : memref<3x1x128xf32, #tpu.memory_space<vmem>>, vector<1x1x128xf32>
    %14 = vector.shape_cast %13 : vector<1x1x128xf32> to vector<1x128xf32>
    %15 = vector.broadcast %14 : vector<1x128xf32> to vector<16x128xf32>
    %16 = arith.addf %12, %15 : vector<16x128xf32>
    %cst_13 = arith.constant 0.000000e+00 : f32
    %17 = vector.broadcast %cst_13 : f32 to vector<16x128xf32>
    %18 = arith.maximumf %16, %17 : vector<16x128xf32>
    %19 = arith.truncf %18 : vector<16x128xf32> to vector<16x128xbf16>
    %c1_14 = arith.constant 1 : index
    %c0_15 = arith.constant 0 : index
    %c0_16 = arith.constant 0 : index
    %20 = vector.load %arg3[%c1_14, %c0_15, %c0_16] : memref<2x128x128xbf16, #tpu.memory_space<vmem>>, vector<1x128x128xbf16>
    %21 = vector.shape_cast %20 : vector<1x128x128xbf16> to vector<128x128xbf16>
    %cst_17 = arith.constant dense<0.000000e+00> : vector<16x128xf32>
    %22 = tpu.matmul %19, %21, %cst_17 {dimension_numbers = #tpu.dot_dimension_numbers<[1], [0], [0], [1], [0, 0, 1, 1], [], []>} : vector<16x128xbf16>, vector<128x128xbf16>, vector<16x128xf32> -> vector<16x128xf32>
    %c2 = arith.constant 2 : index
    %c0_18 = arith.constant 0 : index
    %c0_19 = arith.constant 0 : index
    %23 = vector.load %arg4[%c2, %c0_18, %c0_19] : memref<3x1x128xf32, #tpu.memory_space<vmem>>, vector<1x1x128xf32>
    %24 = vector.shape_cast %23 : vector<1x1x128xf32> to vector<1x128xf32>
    %25 = vector.broadcast %24 : vector<1x128xf32> to vector<16x128xf32>
    %26 = arith.addf %22, %25 : vector<16x128xf32>
    %27 = arith.truncf %26 : vector<16x128xf32> to vector<16x128xbf16>
    %c0_20 = arith.constant 0 : index
    %c0_21 = arith.constant 0 : index
    %28 = vector.load %arg5[%c0_20, %c0_21] : memref<16x128xbf16, #tpu.memory_space<vmem>>, vector<16x128xbf16>
    tpu.vector_store %arg5[%c0_20, %c0_21], %27 {strides = array<i32>} : memref<16x128xbf16, #tpu.memory_space<vmem>>, vector<16x128xbf16>,
    return
  }
  func.func @transform_0(%arg0: i32) -> (i32, i32) {
    %c0_i32 = arith.constant 0 : i32
    %c0_i32_0 = arith.constant 0 : i32
    return %arg0, %c0_i32 : i32, i32
  }
  func.func @transform_1(%arg0: i32) -> (i32, i32) {
    %c0_i32 = arith.constant 0 : i32
    %c0_i32_0 = arith.constant 0 : i32
    %c0_i32_1 = arith.constant 0 : i32
    return %c0_i32, %c0_i32_0 : i32, i32
  }
  func.func @transform_2(%arg0: i32) -> (i32, i32, i32) {
    %c0_i32 = arith.constant 0 : i32
    %c0_i32_0 = arith.constant 0 : i32
    %c0_i32_1 = arith.constant 0 : i32
    %c0_i32_2 = arith.constant 0 : i32
    return %c0_i32, %c0_i32_0, %c0_i32_1 : i32, i32, i32
  }
  func.func @transform_3(%arg0: i32) -> (i32, i32, i32) {
    %c0_i32 = arith.constant 0 : i32
    %c0_i32_0 = arith.constant 0 : i32
    %c0_i32_1 = arith.constant 0 : i32
    %c0_i32_2 = arith.constant 0 : i32
    return %c0_i32, %c0_i32_0, %c0_i32_1 : i32, i32, i32
  }
  func.func @transform_4(%arg0: i32) -> (i32, i32) {
    %c0_i32 = arith.constant 0 : i32
    %c0_i32_0 = arith.constant 0 : i32
    return %arg0, %c0_i32 : i32, i32
  }
}

</mosaic_0001>

<llo_original>
// kernel: target_network_forward_packed.1
$region0: #{target_network_forward_packed.1}
  #allocation0 [shape = 'u32[]', space=smem, size = 0x4, offset = 0x4, fixed_abs, tag = 'smem constant byte address 0x4 - core index']
  #allocation1 [shape = 'u32[144,128]{1,0:T(1,128)}', space=vmem, size = 0x12000, scoped, tag = 'internal scratch']
  %s0 = inlined_call_operand.vmem [shape: f32[16,4], index: 0, kind: input, shape index: {}]
  %s1 = inlined_call_operand.vmem [shape: f32[4,128], index: 1, kind: input, shape index: {}]
  %s2 = inlined_call_operand.hbm [shape: bf16[2,128,128], index: 2, kind: input, shape index: {}]
  %s3 = inlined_call_operand.vmem [shape: f32[3,1,128], index: 3, kind: input, shape index: {}]
  %s4 = inlined_call_operand.vmem [shape: bf16[16,128], index: 4, kind: output, shape index: {}]
  %s5 = sld [smem:[#allocation0]]
  $region30: #{target_network_forward_packed.1} parent=0
    _
  %s7 = ssub.s32 1, %s5
  %s8 = scalar_select 0, %s7, %s5
  $region1: #{target_network_forward_packed.1} parent=0
    #allocation2 [shape = 'u8[65536]{0}', space=vmem, size = 0x10000, scoped, tag = 'input window, operand 2, single buffered']
    #allocation3 [shape = 's32[1]{0}', space=sflag, size = 0x4, scoped, tag = 'scoped memory for target_network_forward_packed.1']
    %9 = vsyncpa [#allocation3], 0
    // Predicated region
    $region2: #{target_network_forward_packed.1} parent=1 // pred_check
      _
    $region3: #{target_network_forward_packed.1} parent=1 // pred_check_branch
      %11 = sbr.rel (0) target = $region5
    $region4: #{target_network_forward_packed.1} parent=1 // pred_region
      _
    $region5: #{target_network_forward_packed.1} parent=1 // pred_fallthru
      _
    // Predicated region
    $region6: #{target_network_forward_packed.1} parent=1 // pred_check
      _
    $region7: #{target_network_forward_packed.1} parent=1 // pred_check_branch
      %13 = sbr.rel (0) target = $region9
    $region8: #{target_network_forward_packed.1} parent=1 // pred_region
      _
    $region9: #{target_network_forward_packed.1} parent=1 // pred_fallthru
      _
    // Predicated region
    $region10: #{target_network_forward_packed.1} parent=1 // pred_check
      _
    $region11: #{target_network_forward_packed.1} parent=1 // pred_check_branch
      %15 = sbr.rel (0) target = $region13
    $region12: #{target_network_forward_packed.1} parent=1 // pred_region
      %s17 = ssub.s32 2048, 2048
      %18 = vsyncadd [#allocation3], %s17
      %s19 = sshll.u32 [#allocation2], 4
      %s20 = int_to_ptr.vmem [resolvable:$true] %s19
      %25 = dma.hbm_to_vmem [thread:$0]  %s2, 2048, %s20, [#allocation3], 64, 64, 4
    $region13: #{target_network_forward_packed.1} parent=1 // pred_fallthru
      _
    // Predicated region
    $region14: #{target_network_forward_packed.1} parent=1 // pred_check
      _
    $region15: #{target_network_forward_packed.1} parent=1 // pred_check_branch
      %27 = sbr.rel (0) target = $region17
    $region16: #{target_network_forward_packed.1} parent=1 // pred_region
      _
    $region17: #{target_network_forward_packed.1} parent=1 // pred_fallthru
      _
    // Predicated region
    $region18: #{target_network_forward_packed.1} parent=1 // pred_check
      _
    $region19: #{target_network_forward_packed.1} parent=1 // pred_check_branch
      %29 = sbr.rel (0) target = $region21
    $region20: #{target_network_forward_packed.1} parent=1 // pred_region
      %30 = dma.done [#allocation3], 2048
    $region21: #{target_network_forward_packed.1} parent=1 // pred_fallthru
      _
    %v32 = vld [vmem:[%s0] sm:$0xff]
    %v33 = vld [vmem:[%s0 + $0x8] sm:$0xff]
    %v34 = vld [vmem:[%s1] sm:$0xf]
    %v35 = vld [vmem:[%s3] sm:$0x1]
    %v37 = vlaneseq
    %v38 = vshrl.u32 %v37, 7
    %v39 = vsub.s32 0, %v38
    %v40 = vrot.slane %v35, %v39
    %vm42 = vcmask 31744
    %v44 = vsel %vm42, %v32, 0
    %v47 = vsel %vm42, %v33, 0
    %vm49 = vcmask 1043456
    %v51 = vsel %vm49, %v34, 0
    %53 = vmatprep.subr.mxu0 0.0
    %54 = vmatpush1.msra.mxu0 %v51
    %55 = vmatprep.subr.mxu0 0.0
    %56 = vmatpush1.msra.mxu0 0.0
    %57 = vmatprep.subr.mxu0 0.0
    %58 = vmatpush1.msra.mxu0 0.0
    %59 = vmatprep.subr.mxu0 0.0
    %60 = vmatpush1.msra.mxu0 0.0
    %61 = vmatprep.subr.mxu0 0.0
    %62 = vmatpush1.msra.mxu0 0.0
    %63 = vmatprep.subr.mxu0 0.0
    %64 = vmatpush1.msra.mxu0 0.0
    %65 = vmatprep.subr.mxu0 0.0
    %66 = vmatpush1.msra.mxu0 0.0
    %67 = vmatprep.subr.mxu0 0.0
    %68 = vmatpush1.msra.mxu0 0.0
    %69 = vmatprep.subr.mxu0 0.0
    %70 = vmatpush1.msra.mxu0 0.0
    %71 = vmatprep.subr.mxu0 0.0
    %72 = vmatpush1.msra.mxu0 0.0
    %73 = vmatprep.subr.mxu0 0.0
    %74 = vmatpush1.msra.mxu0 0.0
    %75 = vmatprep.subr.mxu0 0.0
    %76 = vmatpush1.msra.mxu0 0.0
    %77 = vmatprep.subr.mxu0 0.0
    %78 = vmatpush1.msra.mxu0 0.0
    %79 = vmatprep.subr.mxu0 0.0
    %80 = vmatpush1.msra.mxu0 0.0
    %81 = vmatprep.subr.mxu0 0.0
    %82 = vmatpush1.msra.mxu0 0.0
    %83 = vmatprep.subr.mxu0 0.0
    %84 = vmatpush1.msra.mxu0 0.0
    %85 = vmatprep.subr.mxu0 0.0
    %86 = vmatpush1.msra.mxu0 0.0
    %87 = vmatprep.subr.mxu0 0.0
    %88 = vmatpush1.msra.mxu0 0.0
    %89 = vmatprep.subr.mxu0 0.0
    %90 = vmatpush1.msra.mxu0 0.0
    %91 = vmatprep.subr.mxu0 0.0
    %92 = vmatpush1.msra.mxu0 0.0
    %93 = vmatprep.subr.mxu0 0.0
    %94 = vmatpush1.msra.mxu0 0.0
    %95 = vmatprep.subr.mxu0 0.0
    %96 = vmatpush1.msra.mxu0 0.0
    %97 = vmatprep.subr.mxu0 0.0
    %98 = vmatpush1.msra.mxu0 0.0
    %99 = vmatprep.subr.mxu0 0.0
    %100 = vmatpush1.msra.mxu0 0.0
    %101 = vmatprep.subr.mxu0 0.0
    %102 = vmatpush1.msra.mxu0 0.0
    %103 = vmatprep.subr.mxu0 0.0
    %104 = vmatpush1.msra.mxu0 0.0
    %105 = vmatprep.subr.mxu0 0.0
    %106 = vmatpush1.msra.mxu0 0.0
    %107 = vmatprep.subr.mxu0 0.0
    %108 = vmatpush1.msra.mxu0 0.0
    %109 = vmatprep.subr.mxu0 0.0
    %110 = vmatpush1.msra.mxu0 0.0
    %111 = vmatprep.subr.mxu0 0.0
    %112 = vmatpush1.msra.mxu0 0.0
    %113 = vmatprep.subr.mxu0 0.0
    %114 = vmatpush1.msra.mxu0 0.0
    %115 = vmatprep.subr.mxu0 0.0
    %116 = vmatpush1.msra.mxu0 0.0
    %117 = vmatprep.mubr.f32.mxu0 0.0
    %118 = vmatmul.mubr.f32.gmra.mrb[0].mxu0 %v44
    %v119 = vpop.f32.mrb[0].mxu0
    %v120 = vadd.f32 %v40, %v119
    %v121 = vpop.f32.mrb[0].mxu0
    %122 = vmatprep.mubr.f32.mxu0 0.0
    %123 = vmatmul.mubr.f32.gmra.mrb[0].mxu0 %v47
    %v124 = vpop.f32.mrb[0].mxu0
    %v125 = vadd.f32 %v40, %v124
    %v126 = vpop.f32.mrb[0].mxu0
    %127 = vdwg.mxu0
    %v128 = vmax.f32 %v120, 0.0
    %v129 = vmax.f32 %v125, 0.0
    %v130 = vpack.c.bf16 %v129, %v128
    %v131 = vld [vmem:[#allocation2] sm:$0xf]
    %v132 = vld [vmem:[#allocation2 + $0x4] sm:$0xf]
    %v133 = vld [vmem:[#allocation2 + $0x8] sm:$0xf]
    %v134 = vld [vmem:[#allocation2 + $0xc] sm:$0xf]
    %v135 = vld [vmem:[#allocation2 + $0x10] sm:$0xf]
    %v136 = vld [vmem:[#allocation2 + $0x14] sm:$0xf]
    %v137 = vld [vmem:[#allocation2 + $0x18] sm:$0xf]
    %v138 = vld [vmem:[#allocation2 + $0x1c] sm:$0xf]
    %v139 = vld [vmem:[#allocation2 + $0x20] sm:$0xf]
    %v140 = vld [vmem:[#allocation2 + $0x24] sm:$0xf]
    %v141 = vld [vmem:[#allocation2 + $0x28] sm:$0xf]
    %v142 = vld [vmem:[#allocation2 + $0x2c] sm:$0xf]
    %v143 = vld [vmem:[#allocation2 + $0x30] sm:$0xf]
    %v144 = vld [vmem:[#allocation2 + $0x34] sm:$0xf]
    %v145 = vld [vmem:[#allocation2 + $0x38] sm:$0xf]
    %v146 = vld [vmem:[#allocation2 + $0x3c] sm:$0xf]
    %s147 = scalar_lea.vmem %s3, 1
    %v148 = vld [vmem:[%s147] sm:$0x1]
    %v150 = vlaneseq
    %v151 = vshrl.u32 %v150, 7
    %v152 = vsub.s32 0, %v151
    %v153 = vrot.slane %v148, %v152
    %v171 = vunpack.c.l.b16 %v131
    %v172 = vunpack.c.l.b16 %v132
    %v173 = vunpack.c.l.b16 %v133
    %v174 = vunpack.c.l.b16 %v134
    %v175 = vunpack.c.l.b16 %v135
    %v176 = vunpack.c.l.b16 %v136
    %v177 = vunpack.c.l.b16 %v137
    %v178 = vunpack.c.l.b16 %v138
    %v179 = vunpack.c.l.b16 %v139
    %v180 = vunpack.c.l.b16 %v140
    %v181 = vunpack.c.l.b16 %v141
    %v182 = vunpack.c.l.b16 %v142
    %v183 = vunpack.c.l.b16 %v143
    %v184 = vunpack.c.l.b16 %v144
    %v185 = vunpack.c.l.b16 %v145
    %v186 = vunpack.c.l.b16 %v146
    %v187 = vpack.c.b16 %v172, %v171
    %v188 = vpack.c.b16 %v174, %v173
    %v189 = vpack.c.b16 %v176, %v175
    %v190 = vpack.c.b16 %v178, %v177
    %v191 = vpack.c.b16 %v180, %v179
    %v192 = vpack.c.b16 %v182, %v181
    %v193 = vpack.c.b16 %v184, %v183
    %v194 = vpack.c.b16 %v186, %v185
    %203 = vmatprep.subr.bf16.mxu0 0
    %204 = vmatpush1.bf16.msra.mxu0 %v187
    %205 = vmatprep.subr.bf16.mxu0 0
    %206 = vmatpush1.bf16.msra.mxu0 %v188
    %207 = vmatprep.subr.bf16.mxu0 0
    %208 = vmatpush1.bf16.msra.mxu0 %v189
    %209 = vmatprep.subr.bf16.mxu0 0
    %210 = vmatpush1.bf16.msra.mxu0 %v190
    %211 = vmatprep.subr.bf16.mxu0 0
    %212 = vmatpush1.bf16.msra.mxu0 %v191
    %213 = vmatprep.subr.bf16.mxu0 0
    %214 = vmatpush1.bf16.msra.mxu0 %v192
    %215 = vmatprep.subr.bf16.mxu0 0
    %216 = vmatpush1.bf16.msra.mxu0 %v193
    %217 = vmatprep.subr.bf16.mxu0 0
    %218 = vmatpush1.bf16.msra.mxu0 %v194
    %219 = vmatprep.subr.bf16.mxu0 0
    %220 = vmatpush1.bf16.msra.mxu0 0
    %221 = vmatprep.subr.bf16.mxu0 0
    %222 = vmatpush1.bf16.msra.mxu0 0
    %223 = vmatprep.subr.bf16.mxu0 0
    %224 = vmatpush1.bf16.msra.mxu0 0
    %225 = vmatprep.subr.bf16.mxu0 0
    %226 = vmatpush1.bf16.msra.mxu0 0
    %227 = vmatprep.subr.bf16.mxu0 0
    %228 = vmatpush1.bf16.msra.mxu0 0
    %229 = vmatprep.subr.bf16.mxu0 0
    %230 = vmatpush1.bf16.msra.mxu0 0
    %231 = vmatprep.subr.bf16.mxu0 0
    %232 = vmatpush1.bf16.msra.mxu0 0
    %233 = vmatprep.subr.bf16.mxu0 0
    %234 = vmatpush1.bf16.msra.mxu0 0
    %235 = vmatprep.mubr.bf16.mxu0 0
    %236 = vmatmul.mubr.bf16.gmra.mrb[0].mxu0 %v130
    %v237 = vpop.f32.mrb[0].mxu0
    %v238 = vadd.f32 %v153, %v237
    %v239 = vpop.f32.mrb[0].mxu0
    %v240 = vpop.f32.mrb[0].mxu0
    %v241 = vadd.f32 %v153, %v240
    %v242 = vpop.f32.mrb[0].mxu0
    %243 = vdwg.mxu0
    %v244 = vmax.f32 %v238, 0.0
    %v245 = vmax.f32 %v241, 0.0
    %v246 = vpack.c.bf16 %v245, %v244
    %s247 = scalar_lea.vmem [#allocation2], 64
    %v248 = vld [vmem:[%s247] sm:$0xf]
    %v249 = vld [vmem:[%s247 + $0x4] sm:$0xf]
    %v250 = vld [vmem:[%s247 + $0x8] sm:$0xf]
    %v251 = vld [vmem:[%s247 + $0xc] sm:$0xf]
    %v252 = vld [vmem:[%s247 + $0x10] sm:$0xf]
    %v253 = vld [vmem:[%s247 + $0x14] sm:$0xf]
    %v254 = vld [vmem:[%s247 + $0x18] sm:$0xf]
    %v255 = vld [vmem:[%s247 + $0x1c] sm:$0xf]
    %v256 = vld [vmem:[%s247 + $0x20] sm:$0xf]
    %v257 = vld [vmem:[%s247 + $0x24] sm:$0xf]
    %v258 = vld [vmem:[%s247 + $0x28] sm:$0xf]
    %v259 = vld [vmem:[%s247 + $0x2c] sm:$0xf]
    %v260 = vld [vmem:[%s247 + $0x30] sm:$0xf]
    %v261 = vld [vmem:[%s247 + $0x34] sm:$0xf]
    %v262 = vld [vmem:[%s247 + $0x38] sm:$0xf]
    %v263 = vld [vmem:[%s247 + $0x3c] sm:$0xf]
    %s264 = scalar_lea.vmem %s3, 2
    %v265 = vld [vmem:[%s264] sm:$0x1]
    %v267 = vlaneseq
    %v268 = vshrl.u32 %v267, 7
    %v269 = vsub.s32 0, %v268
    %v270 = vrot.slane %v265, %v269
    %v288 = vunpack.c.l.b16 %v248
    %v289 = vunpack.c.l.b16 %v249
    %v290 = vunpack.c.l.b16 %v250
    %v291 = vunpack.c.l.b16 %v251
    %v292 = vunpack.c.l.b16 %v252
    %v293 = vunpack.c.l.b16 %v253
    %v294 = vunpack.c.l.b16 %v254
    %v295 = vunpack.c.l.b16 %v255
    %v296 = vunpack.c.l.b16 %v256
    %v297 = vunpack.c.l.b16 %v257
    %v298 = vunpack.c.l.b16 %v258
    %v299 = vunpack.c.l.b16 %v259
    %v300 = vunpack.c.l.b16 %v260
    %v301 = vunpack.c.l.b16 %v261
    %v302 = vunpack.c.l.b16 %v262
    %v303 = vunpack.c.l.b16 %v263
    %v304 = vpack.c.b16 %v289, %v288
    %v305 = vpack.c.b16 %v291, %v290
    %v306 = vpack.c.b16 %v293, %v292
    %v307 = vpack.c.b16 %v295, %v294
    %v308 = vpack.c.b16 %v297, %v296
    %v309 = vpack.c.b16 %v299, %v298
    %v310 = vpack.c.b16 %v301, %v300
    %v311 = vpack.c.b16 %v303, %v302
    %320 = vmatprep.subr.bf16.mxu0 0
    %321 = vmatpush1.bf16.msra.mxu0 %v304
    %322 = vmatprep.subr.bf16.mxu0 0
    %323 = vmatpush1.bf16.msra.mxu0 %v305
    %324 = vmatprep.subr.bf16.mxu0 0
    %325 = vmatpush1.bf16.msra.mxu0 %v306
    %326 = vmatprep.subr.bf16.mxu0 0
    %327 = vmatpush1.bf16.msra.mxu0 %v307
    %328 = vmatprep.subr.bf16.mxu0 0
    %329 = vmatpush1.bf16.msra.mxu0 %v308
    %330 = vmatprep.subr.bf16.mxu0 0
    %331 = vmatpush1.bf16.msra.mxu0 %v309
    %332 = vmatprep.subr.bf16.mxu0 0
    %333 = vmatpush1.bf16.msra.mxu0 %v310
    %334 = vmatprep.subr.bf16.mxu0 0
    %335 = vmatpush1.bf16.msra.mxu0 %v311
    %336 = vmatprep.subr.bf16.mxu0 0
    %337 = vmatpush1.bf16.msra.mxu0 0
    %338 = vmatprep.subr.bf16.mxu0 0
    %339 = vmatpush1.bf16.msra.mxu0 0
    %340 = vmatprep.subr.bf16.mxu0 0
    %341 = vmatpush1.bf16.msra.mxu0 0
    %342 = vmatprep.subr.bf16.mxu0 0
    %343 = vmatpush1.bf16.msra.mxu0 0
    %344 = vmatprep.subr.bf16.mxu0 0
    %345 = vmatpush1.bf16.msra.mxu0 0
    %346 = vmatprep.subr.bf16.mxu0 0
    %347 = vmatpush1.bf16.msra.mxu0 0
    %348 = vmatprep.subr.bf16.mxu0 0
    %349 = vmatpush1.bf16.msra.mxu0 0
    %350 = vmatprep.subr.bf16.mxu0 0
    %351 = vmatpush1.bf16.msra.mxu0 0
    %352 = vmatprep.mubr.bf16.mxu0 0
    %353 = vmatmul.mubr.bf16.gmra.mrb[0].mxu0 %v246
    %v354 = vpop.f32.mrb[0].mxu0
    %v355 = vadd.f32 %v270, %v354
    %v356 = vpop.f32.mrb[0].mxu0
    %v357 = vpop.f32.mrb[0].mxu0
    %v358 = vadd.f32 %v270, %v357
    %v359 = vpop.f32.mrb[0].mxu0
    %360 = vdwg.mxu0
    %v361 = vpack.c.bf16 %v358, %v355
    %v363 = vunpack.c.l.b16 %v361
    %v364 = vunpack.c.h.b16 %v361
    %v365 = vpack.c.b16 %v363, %v363
    %v366 = vpack.c.b16 %v364, %v364
    %369 = vst [vmem:[%s4] sm:$0xf] %v365
    %370 = vst [vmem:[%s4 + $0x4] sm:$0xf] %v366
    // Predicated region
    $region22: #{target_network_forward_packed.1} parent=1 // pred_check
      _
    $region23: #{target_network_forward_packed.1} parent=1 // pred_check_branch
      %372 = sbr.rel (0) target = $region25
    $region24: #{target_network_forward_packed.1} parent=1 // pred_region
      _
    $region25: #{target_network_forward_packed.1} parent=1 // pred_fallthru
      _
    // Predicated region
    $region26: #{target_network_forward_packed.1} parent=1 // pred_check
      _
    $region27: #{target_network_forward_packed.1} parent=1 // pred_check_branch
      %374 = sbr.rel (0) target = $region29
    $region28: #{target_network_forward_packed.1} parent=1 // pred_region
      _
    $region29: #{target_network_forward_packed.1} parent=1 // pred_fallthru
      _
    %375 = vsyncpa [#allocation3], 1

</llo_original>
